<compile_context>
chip_gen: v6e
topology: v6e:2x2x1
jax: 0.10.0
libtpu: 0.0.40
codegen_flags: <defaults>
</compile_context>

<pallas_src>
import jax
import jax.numpy as jnp
from jax.experimental import pallas as pl
from jax.experimental.pallas import tpu as pltpu

BN_EPS = 1e-5  # nn.BatchNorm2d default eps


# ---------------------------------------------------------------- kernel ----

def attention_kernel(g_ref, x_ref, wg_ref, wx_ref, b1_ref, wp_ref, bp_ref,
                     o_ref):
    """One (batch, pixel-tile) grid step.

    g_ref : (F_g, TM)   bf16     x_ref : (F_l, TM)   bf16
    wg_ref: (F_int,F_g) bf16     wx_ref: (F_int,F_l) bf16   b1_ref: (F_int,1) f32
    wp_ref: (1, F_int)  f32      bp_ref: (1, 1)      f32
    o_ref : (F_l, TM)   out dtype
    """
    x = x_ref[...]                                             # bf16 tile
    # g1 + x1 (BN folded into weights; both conv biases pre-summed into b1).
    pre = (jnp.dot(wg_ref[...], g_ref[...], preferred_element_type=jnp.float32)
           + jnp.dot(wx_ref[...], x, preferred_element_type=jnp.float32)
           + b1_ref[...])
    a = jnp.maximum(pre, 0.0)                                  # ReLU (f32, VPU)
    # psi 1x1 conv (F_int -> 1) on the MXU (keeps VPU/XLU slots free).
    s = jnp.dot(wp_ref[...], a, preferred_element_type=jnp.float32) + bp_ref[...]
    psi = pl.reciprocal(1.0 + jnp.exp(-s), approx=True)        # sigmoid (EUP)
    # Gate x. Upcast to f32 for the elementwise math (v5e has no bf16 VPU).
    o_ref[...] = (x.astype(jnp.float32) * psi).astype(o_ref.dtype)


# ----------------------------------------------------------- tiling logic ---

def _pick_tiling(n, hw, f_g, f_l, act_bytes, out_bytes, requested_block_m):
    """Derive (block_m, grid_m, vmem_limit) from the chip's VMEM capacity."""
    try:
        vmem_cap = int(pltpu.get_tpu_info().vmem_capacity_bytes)
    except Exception:  # pragma: no cover - conservative fallback (v7x per-core)
        vmem_cap = 64 * 1024 * 1024

    # Per-step working set: double-buffered g/x input tiles + output tile.
    budget = int(vmem_cap * 0.6)
    per_col = 2 * ((f_g + f_l) * act_bytes + f_l * out_bytes)
    max_bm = max(128, (budget // max(per_col, 1)) // 128 * 128)

    if hw <= 128:
        block_m = hw                          # full-extent block: (8,128) rule ok
    else:
        cap = pl.cdiv(hw, 128) * 128          # no point going past round_up(hw,128)
        block_m = max(128, (min(requested_block_m, max_bm, cap) // 128) * 128)
        # v7x has 2 TensorCores: keep >=2 "parallel" grid steps when possible.
        while n * pl.cdiv(hw, block_m) < 2 and block_m % 256 == 0:
            block_m //= 2
    grid_m = pl.cdiv(hw, block_m)
    # Leave headroom below physical VMEM: ~48 MiB on v7x, 100 MiB on v5e/v6e.
    vmem_limit = int(min(max(vmem_cap - (16 << 20), 32 << 20), 100 << 20))
    return block_m, grid_m, vmem_limit


def _attention_pallas(g3, x3, wg, wx, b1, wp_row, bp, *, block_m, out_dtype):
    n, f_g, hw = g3.shape
    f_l = x3.shape[1]
    f_int = wg.shape[0]

    act_bytes = 2                                      # bf16 activation transfer
    out_bytes = jnp.dtype(out_dtype).itemsize
    block_m, grid_m, vmem_limit = _pick_tiling(n, hw, f_g, f_l, act_bytes,
                                               out_bytes, block_m)

    flops = int(2 * n * hw * f_int * (f_g + f_l + 1) + 6 * n * hw * (f_int + f_l))
    bytes_accessed = int(n * hw * ((f_g + f_l) * act_bytes + f_l * out_bytes)
                         + 2 * f_int * (f_g + f_l) + 4 * (2 * f_int + 2))

    return pl.pallas_call(
        attention_kernel,
        out_shape=jax.ShapeDtypeStruct((n, f_l, hw), out_dtype),
        grid_spec=pltpu.PrefetchScalarGridSpec(
            num_scalar_prefetch=0,
            grid=(n, grid_m),
            in_specs=[
                # activations: batch on a squeezed grid axis, lane-dense pixels
                pl.BlockSpec((pl.Squeezed(), f_g, block_m), lambda b, i: (b, 0, i)),
                pl.BlockSpec((pl.Squeezed(), f_l, block_m), lambda b, i: (b, 0, i)),
                # tiny folded weights stay resident in VMEM (constant index_map)
                pl.BlockSpec((f_int, f_g), lambda b, i: (0, 0)),
                pl.BlockSpec((f_int, f_l), lambda b, i: (0, 0)),
                pl.BlockSpec((f_int, 1), lambda b, i: (0, 0)),
                pl.BlockSpec((1, f_int), lambda b, i: (0, 0)),
                pl.BlockSpec((1, 1), lambda b, i: (0, 0)),
            ],
            out_specs=pl.BlockSpec((pl.Squeezed(), f_l, block_m),
                                   lambda b, i: (b, 0, i)),
        ),
        compiler_params=pltpu.CompilerParams(
            dimension_semantics=("parallel", "parallel"),   # megacore on v7x
            vmem_limit_bytes=vmem_limit,
        ),
        cost_estimate=pl.CostEstimate(
            flops=flops, transcendentals=int(n * hw),
            bytes_accessed=bytes_accessed),
    )(g3, x3, wg, wx, b1, wp_row, bp)


# ----------------------------------------------------------- param helpers ---

def fold_bn_into_conv1x1(w, b, gamma, beta, mean, var, eps=BN_EPS):
    """Fold eval-mode BatchNorm into a preceding 1x1 conv. w: (Cout, Cin)."""
    scale = gamma / jnp.sqrt(var + eps)          # (Cout,)
    return w * scale[:, None], (b - mean) * scale + beta


def init_params(f_g, f_l, f_int, key):
    ks = jax.random.split(key, 6)

    def bn_params(c, prefix):
        return {
            f"{prefix}_gamma": 1.0 + 0.05 * jnp.arange(c, dtype=jnp.float32),
            f"{prefix}_beta": 0.02 * jnp.arange(c, dtype=jnp.float32) - 0.1,
            f"{prefix}_mean": 0.03 * jnp.arange(c, dtype=jnp.float32),
            f"{prefix}_var": 1.0 + 0.04 * jnp.arange(c, dtype=jnp.float32),
        }

    p = {
        # 1x1 conv weights stored as (Cout, Cin)  (== PyTorch OIHW squeezed)
        "wg": jax.random.normal(ks[0], (f_int, f_g), jnp.float32) * 0.3,
        "bg": jax.random.normal(ks[1], (f_int,), jnp.float32) * 0.1,
        "wx": jax.random.normal(ks[2], (f_int, f_l), jnp.float32) * 0.3,
        "bx": jax.random.normal(ks[3], (f_int,), jnp.float32) * 0.1,
        "wp": jax.random.normal(ks[4], (1, f_int), jnp.float32) * 0.3,
        "bp": jax.random.normal(ks[5], (1,), jnp.float32) * 0.1,
    }
    p.update(bn_params(f_int, "g"))
    p.update(bn_params(f_int, "x"))
    p.update(bn_params(1, "p"))
    return p


# --------------------------------------------------------------- forward ----

def attention_block(g_nchw, x_nchw, params, *, block_m=2048):
    """Matches AttentionBlock.forward (eval mode). g/x: (N, C, H, W)."""
    n, f_g, h, w = g_nchw.shape
    nx, f_l, hx, wx_ = x_nchw.shape
    # TODO(synk): F.interpolate(bilinear) branch for mismatched spatial shapes
    #             is not implemented.
    assert n == nx and (h, w) == (hx, wx_), "spatial mismatch not supported"
    f_int = params["wg"].shape[0]
    out_dtype = x_nchw.dtype

    wg, bg = fold_bn_into_conv1x1(params["wg"], params["bg"], params["g_gamma"],
                                  params["g_beta"], params["g_mean"],
                                  params["g_var"])
    wx, bx = fold_bn_into_conv1x1(params["wx"], params["bx"], params["x_gamma"],
                                  params["x_beta"], params["x_mean"],
                                  params["x_var"])
    wp, bp = fold_bn_into_conv1x1(params["wp"], params["bp"], params["p_gamma"],
                                  params["p_beta"], params["p_mean"],
                                  params["p_var"])
    b1 = (bg + bx).reshape(f_int, 1).astype(jnp.float32)   # conv biases pre-summed
    wp_row = wp.reshape(1, f_int).astype(jnp.float32)      # psi weight as a row
    bp = bp.reshape(1, 1).astype(jnp.float32)
    wg = wg.astype(jnp.bfloat16)                           # bf16 MXU path
    wx = wx.astype(jnp.bfloat16)

    # Free reshapes (NCHW is contiguous): (N, C, H, W) -> (N, C, H*W).
    # Activations transfer in bf16 (half the HBM bytes); accumulation is f32.
    hw = h * w
    g3 = g_nchw.reshape(n, f_g, hw).astype(jnp.bfloat16)
    x3 = x_nchw.reshape(n, f_l, hw).astype(jnp.bfloat16)

    out3 = _attention_pallas(g3, x3, wg, wx, b1, wp_row, bp,
                             block_m=block_m, out_dtype=out_dtype)
    return out3.reshape(n, f_l, h, w)


# ---------------------------------------------------------- JAX reference ---

def reference(g, x, params):
    def conv1x1(t, w, b):
        return jnp.einsum("oi,nihw->nohw", w, t) + b.reshape(1, -1, 1, 1)

    def bn(t, gamma, beta, mean, var):
        r = lambda a: a.reshape(1, -1, 1, 1)
        return (t - r(mean)) / jnp.sqrt(r(var) + BN_EPS) * r(gamma) + r(beta)

    g1 = bn(conv1x1(g, params["wg"], params["bg"]), params["g_gamma"],
            params["g_beta"], params["g_mean"], params["g_var"])
    x1 = bn(conv1x1(x, params["wx"], params["bx"]), params["x_gamma"],
            params["x_beta"], params["x_mean"], params["x_var"])
    a = jnp.maximum(g1 + x1, 0.0)
    psi = bn(conv1x1(a, params["wp"], params["bp"]), params["p_gamma"],
             params["p_beta"], params["p_mean"], params["p_var"])
    psi = jax.nn.sigmoid(psi)
    return x * psi


# ------------------------------------------------------------------- main ---

if __name__ == "__main__":
    key = jax.random.PRNGKey(0)
    kg, kx, kp = jax.random.split(key, 3)

    N, F_g, F_l, F_int, H, W = 2, 4, 4, 8, 16, 16
    g = jax.random.normal(kg, (N, F_g, H, W), jnp.float32)
    x = jax.random.normal(kx, (N, F_l, H, W), jnp.float32)
    params = init_params(F_g, F_l, F_int, kp)

    # block_m=128 -> grid (2, 2) at this toy size (exercises both grid axes).
    out = jax.block_until_ready(attention_block(g, x, params, block_m=128))
    ref = jax.block_until_ready(reference(g, x, params))

    assert out.shape == (N, F_l, H, W), out.shape
    # bf16 activation/weight transfer => bf16-level tolerance vs. the f32 ref.
    if not bool(jnp.allclose(out, ref, rtol=5e-2, atol=5e-2)):
        raise AssertionError(
            "mismatch vs reference, max abs err="
            f"{float(jnp.max(jnp.abs(out - ref)))}")
    print("KERNEL_OK")
</pallas_src>

<mosaic_0001>
module attributes {stable_mosaic.version = 11 : i64} {
  func.func @attention_kernel(%arg0: i32, %arg1: i32, %arg2: memref<1x4x128xbf16, #tpu.memory_space<vmem>>, %arg3: memref<1x4x128xbf16, #tpu.memory_space<vmem>>, %arg4: memref<8x4xbf16, #tpu.memory_space<vmem>>, %arg5: memref<8x4xbf16, #tpu.memory_space<vmem>>, %arg6: memref<8x1xf32, #tpu.memory_space<vmem>>, %arg7: memref<1x8xf32, #tpu.memory_space<vmem>>, %arg8: memref<1x1xf32, #tpu.memory_space<vmem>>, %arg9: memref<1x4x128xf32, #tpu.memory_space<vmem>>) attributes {dimension_semantics = [#tpu.dimension_semantics<parallel>, #tpu.dimension_semantics<parallel>], iteration_bounds = array<i64: 2, 2>, scalar_prefetch = 0 : i64, scratch_operands = 0 : i64, tpu.core_type = #tpu.core_type<tc>, window_params = [{transform_indices = @transform_0, window_bounds = array<i64: 1, 4, 128>}, {transform_indices = @transform_1, window_bounds = array<i64: 1, 4, 128>}, {pipeline_mode = #tpu.pipeline_mode<synchronous>, transform_indices = @transform_2, window_bounds = array<i64: 8, 4>}, {pipeline_mode = #tpu.pipeline_mode<synchronous>, transform_indices = @transform_3, window_bounds = array<i64: 8, 4>}, {pipeline_mode = #tpu.pipeline_mode<synchronous>, transform_indices = @transform_4, window_bounds = array<i64: 8, 1>}, {pipeline_mode = #tpu.pipeline_mode<synchronous>, transform_indices = @transform_5, window_bounds = array<i64: 1, 8>}, {pipeline_mode = #tpu.pipeline_mode<synchronous>, transform_indices = @transform_6, window_bounds = array<i64: 1, 1>}, {transform_indices = @transform_7, window_bounds = array<i64: 1, 4, 128>}]} {
    %c0 = arith.constant 0 : index
    %c0_0 = arith.constant 0 : index
    %c0_1 = arith.constant 0 : index
    %0 = vector.load %arg3[%c0, %c0_0, %c0_1] : memref<1x4x128xbf16, #tpu.memory_space<vmem>>, vector<1x4x128xbf16>
    %1 = vector.shape_cast %0 : vector<1x4x128xbf16> to vector<4x128xbf16>
    %c0_2 = arith.constant 0 : index
    %c0_3 = arith.constant 0 : index
    %2 = vector.load %arg4[%c0_2, %c0_3] : memref<8x4xbf16, #tpu.memory_space<vmem>>, vector<8x4xbf16>
    %c0_4 = arith.constant 0 : index
    %c0_5 = arith.constant 0 : index
    %c0_6 = arith.constant 0 : index
    %3 = vector.load %arg2[%c0_4, %c0_5, %c0_6] : memref<1x4x128xbf16, #tpu.memory_space<vmem>>, vector<1x4x128xbf16>
    %4 = vector.shape_cast %3 : vector<1x4x128xbf16> to vector<4x128xbf16>
    %cst = arith.constant dense<0.000000e+00> : vector<8x128xf32>
    %5 = tpu.matmul %2, %4, %cst {dimension_numbers = #tpu.dot_dimension_numbers<[1], [0], [0], [1], [0, 0, 1, 1], [], []>} : vector<8x4xbf16>, vector<4x128xbf16>, vector<8x128xf32> -> vector<8x128xf32>
    %c0_7 = arith.constant 0 : index
    %c0_8 = arith.constant 0 : index
    %6 = vector.load %arg5[%c0_7, %c0_8] : memref<8x4xbf16, #tpu.memory_space<vmem>>, vector<8x4xbf16>
    %cst_9 = arith.constant dense<0.000000e+00> : vector<8x128xf32>
    %7 = tpu.matmul %6, %1, %cst_9 {dimension_numbers = #tpu.dot_dimension_numbers<[1], [0], [0], [1], [0, 0, 1, 1], [], []>} : vector<8x4xbf16>, vector<4x128xbf16>, vector<8x128xf32> -> vector<8x128xf32>
    %8 = arith.addf %5, %7 : vector<8x128xf32>
    %c0_10 = arith.constant 0 : index
    %c0_11 = arith.constant 0 : index
    %9 = vector.load %arg6[%c0_10, %c0_11] : memref<8x1xf32, #tpu.memory_space<vmem>>, vector<8x1xf32>
    %10 = vector.broadcast %9 : vector<8x1xf32> to vector<8x128xf32>
    %11 = arith.addf %8, %10 : vector<8x128xf32>
    %cst_12 = arith.constant 0.000000e+00 : f32
    %12 = vector.broadcast %cst_12 : f32 to vector<8x128xf32>
    %13 = arith.maximumf %11, %12 : vector<8x128xf32>
    %c0_13 = arith.constant 0 : index
    %c0_14 = arith.constant 0 : index
    %14 = vector.load %arg7[%c0_13, %c0_14] : memref<1x8xf32, #tpu.memory_space<vmem>>, vector<1x8xf32>
    %cst_15 = arith.constant dense<0.000000e+00> : vector<1x128xf32>
    %15 = tpu.matmul %14, %13, %cst_15 {dimension_numbers = #tpu.dot_dimension_numbers<[1], [0], [0], [1], [0, 0, 1, 1], [], []>} : vector<1x8xf32>, vector<8x128xf32>, vector<1x128xf32> -> vector<1x128xf32>
    %c0_16 = arith.constant 0 : index
    %c0_17 = arith.constant 0 : index
    %16 = vector.load %arg8[%c0_16, %c0_17] : memref<1x1xf32, #tpu.memory_space<vmem>>, vector<1x1xf32>
    %17 = vector.broadcast %16 : vector<1x1xf32> to vector<1x128xf32>
    %18 = arith.addf %15, %17 : vector<1x128xf32>
    %cst_18 = arith.constant 0.000000e+00 : f32
    %19 = vector.broadcast %cst_18 : f32 to vector<1x128xf32>
    %20 = arith.subf %19, %18 : vector<1x128xf32>
    %21 = math.exp %20 : vector<1x128xf32>
    %cst_19 = arith.constant 1.000000e+00 : f32
    %22 = vector.broadcast %cst_19 : f32 to vector<1x128xf32>
    %23 = arith.addf %22, %21 : vector<1x128xf32>
    %24 = tpu.reciprocal %23 {approx = true} : vector<1x128xf32> -> vector<1x128xf32>
    %25 = arith.extf %1 : vector<4x128xbf16> to vector<4x128xf32>
    %26 = vector.broadcast %24 : vector<1x128xf32> to vector<4x128xf32>
    %27 = arith.mulf %25, %26 : vector<4x128xf32>
    %c0_20 = arith.constant 0 : index
    %c0_21 = arith.constant 0 : index
    %c0_22 = arith.constant 0 : index
    %28 = vector.load %arg9[%c0_20, %c0_21, %c0_22] : memref<1x4x128xf32, #tpu.memory_space<vmem>>, vector<1x4x128xf32>
    %29 = vector.shape_cast %28 : vector<1x4x128xf32> to vector<4x128xf32>
    %30 = vector.shape_cast %27 : vector<4x128xf32> to vector<1x4x128xf32>
    tpu.vector_store %arg9[%c0_20, %c0_21, %c0_22], %30 {strides = array<i32>} : memref<1x4x128xf32, #tpu.memory_space<vmem>>, vector<1x4x128xf32>,
    return
  }
  func.func @transform_0(%arg0: i32, %arg1: i32) -> (i32, i32, i32) {
    %c0_i32 = arith.constant 0 : i32
    %c0_i32_0 = arith.constant 0 : i32
    return %arg0, %c0_i32, %arg1 : i32, i32, i32
  }
  func.func @transform_1(%arg0: i32, %arg1: i32) -> (i32, i32, i32) {
    %c0_i32 = arith.constant 0 : i32
    %c0_i32_0 = arith.constant 0 : i32
    return %arg0, %c0_i32, %arg1 : i32, i32, i32
  }
  func.func @transform_2(%arg0: i32, %arg1: i32) -> (i32, i32) {
    %c0_i32 = arith.constant 0 : i32
    %c0_i32_0 = arith.constant 0 : i32
    %c0_i32_1 = arith.constant 0 : i32
    return %c0_i32, %c0_i32_0 : i32, i32
  }
  func.func @transform_3(%arg0: i32, %arg1: i32) -> (i32, i32) {
    %c0_i32 = arith.constant 0 : i32
    %c0_i32_0 = arith.constant 0 : i32
    %c0_i32_1 = arith.constant 0 : i32
    return %c0_i32, %c0_i32_0 : i32, i32
  }
  func.func @transform_4(%arg0: i32, %arg1: i32) -> (i32, i32) {
    %c0_i32 = arith.constant 0 : i32
    %c0_i32_0 = arith.constant 0 : i32
    %c0_i32_1 = arith.constant 0 : i32
    return %c0_i32, %c0_i32_0 : i32, i32
  }
  func.func @transform_5(%arg0: i32, %arg1: i32) -> (i32, i32) {
    %c0_i32 = arith.constant 0 : i32
    %c0_i32_0 = arith.constant 0 : i32
    %c0_i32_1 = arith.constant 0 : i32
    return %c0_i32, %c0_i32_0 : i32, i32
  }
  func.func @transform_6(%arg0: i32, %arg1: i32) -> (i32, i32) {
    %c0_i32 = arith.constant 0 : i32
    %c0_i32_0 = arith.constant 0 : i32
    %c0_i32_1 = arith.constant 0 : i32
    return %c0_i32, %c0_i32_0 : i32, i32
  }
  func.func @transform_7(%arg0: i32, %arg1: i32) -> (i32, i32, i32) {
    %c0_i32 = arith.constant 0 : i32
    %c0_i32_0 = arith.constant 0 : i32
    return %arg0, %c0_i32, %arg1 : i32, i32, i32
  }
}

</mosaic_0001>

<llo_original>
// kernel: tpu_custom_call.1
$region0: #{tpu_custom_call.1}
  #allocation0 [shape = 'u32[]', space=smem, size = 0x4, offset = 0x4, fixed_abs, tag = 'smem constant byte address 0x4 - core index']
  #allocation1 [shape = 'u32[144,128]{1,0:T(1,128)}', space=vmem, size = 0x12000, scoped, tag = 'internal scratch']
  #allocation2 [shape = 'f32[1,1]{1,0:T(1,128)S(1)}', space=vmem, size = 0x200, scoped, tag = 'scoped memory for tpu_custom_call.1']
  %s0 = inlined_call_operand.vmem [shape: bf16[2,4,256], index: 0, kind: input, shape index: {}]
  %s1 = inlined_call_operand.vmem [shape: bf16[2,4,256], index: 1, kind: input, shape index: {}]
  %s2 = inlined_call_operand.vmem [shape: bf16[8,4], index: 2, kind: input, shape index: {}]
  %s3 = inlined_call_operand.vmem [shape: bf16[8,4], index: 3, kind: input, shape index: {}]
  %s4 = inlined_call_operand.vmem [shape: f32[8,1], index: 4, kind: input, shape index: {}]
  %s5 = inlined_call_operand.vmem [shape: f32[1,8], index: 5, kind: input, shape index: {}]
  %s6 = inlined_call_operand.<no memory space> [shape: f32[1,1], index: 6, kind: input, shape index: {}]
  %s7 = inlined_call_operand.hbm [shape: f32[2,4,256], index: 7, kind: output, shape index: {}]
  %s8 = sld [smem:[#allocation0]]
  $region61: #{tpu_custom_call.1} parent=0
    _
  %s10 = ssub.s32 1, %s8
  %s11 = scalar_select 0, %s10, %s8
  %v12 = vstv %s6
  %13 = vst [vmem:[#allocation2] sm:$0x1] %v12
  $region1: #{tpu_custom_call.1} parent=0
    #allocation3 [shape = 'u8[4096]{0}', space=vmem, size = 0x1000, scoped, tag = 'output window, operand 0']
    #allocation4 [shape = 's32[2]{0}', space=sflag, size = 0x8, scoped, tag = 'scoped memory for tpu_custom_call.1']
    %14 = vsyncpa [#allocation4], 0
    %s15 = scalar_lea.sflag [#allocation4], 1
    %16 = vsyncpa %s15, 0
    loop: start=0, step=1, limit=6
    $region2: #{tpu_custom_call.1} parent=1 // loop_pre_header
      _
    $region3: #{tpu_custom_call.1} parent=1 // loop_header
      %s18 = sphi 0, %s22
      %p19 = scmp.ge.s32.totalorder %s18, 6
      %s25 = sphi 0, %s37
      %s26 = sphi 0, %s33
      %s27 = sphi 0, %s25
      %s28 = sphi 0, %s26
      %s29 = sphi 0, %s27
      %s30 = sphi 0, %s28
      %s42 = sphi 0, %s44
      %s45 = sphi 0, %s42
      %s46 = sphi 0, %s45
      %s62 = sphi 0, %s46
      %s70 = sphi 0, %s72
      %s73 = sphi 0, %s70
      %s74 = sphi 0, %s73
      %s90 = sphi 0, %s74
      %s94 = sphi 0, %s94
      %s96 = sphi 0, %s94
      %s97 = sphi 0, %s96
      %s111 = sphi 0, %s97
      %s115 = sphi 0, %s115
      %s117 = sphi 0, %s115
      %s118 = sphi 0, %s117
      %s132 = sphi 0, %s118
      %s136 = sphi 0, %s136
      %s138 = sphi 0, %s136
      %s139 = sphi 0, %s138
      %s153 = sphi 0, %s139
      %s157 = sphi 0, %s157
      %s159 = sphi 0, %s157
      %s160 = sphi 0, %s159
      %s174 = sphi 0, %s160
      %s178 = sphi 0, %s178
      %s180 = sphi 0, %s178
      %s181 = sphi 0, %s180
      %s195 = sphi 0, %s181
      %s203 = sphi 0, %s205
      %s206 = sphi 0, %s203
      %s207 = sphi 0, %s206
      %s223 = sphi 0, %s207
    $region4: #{tpu_custom_call.1} parent=1 // loop_header_branch
      %21 = sbr.rel (%p19) target = $region8
    $region5: #{tpu_custom_call.1} parent=1 // loop_body
      %s23 = ssub.s32 %s18, 1
      %s24 = ssub.s32 %s18, 2
      %s31 = sadd.s32 1, %s26
      %p32 = scmp.ge.s32.totalorder %s31, 2
      %s33 = scalar_select %p32, 0, %s31
      %s34 = sadd.s32 1, %s25
      %s35 = scalar_select %p32, %s34, %s25
      %p36 = scmp.ge.s32.totalorder %s35, 2
      %s37 = scalar_select %p36, 0, %s35
      %s38 = ssub.s32 %s25, %s37
      %s39 = ssub.s32 %s26, %s33
      %s40 = sor.u32 %s38, %s39
      %p41 = scmp.eq.s32.totalorder %s40, 0
      %s43 = sadd.s32 %s42, 1
      %s44 = scalar_select %p41, %s42, %s43
      %p47 = pneg %p41
      %p48 = scmp.eq.s32.totalorder %s18, 3
      %p49 = por %p47, %p48
      %p50 = scmp.ne.s32.totalorder %s42, %s45
      %p51 = scmp.eq.s32.totalorder %s18, 0
      %p52 = por %p50, %p51
      %p53 = scmp.ne.s32.totalorder %s42, %s45
      %p54 = scmp.eq.s32.totalorder %s23, 3
      %p55 = por %p53, %p54
      %p56 = scmp.ne.s32.totalorder %s45, %s46
      %p57 = scmp.eq.s32.totalorder %s23, 0
      %p58 = por %p56, %p57
      %p59 = scmp.ne.s32.totalorder %s45, %s46
      %p60 = scmp.eq.s32.totalorder %s24, 3
      %p61 = por %p59, %p60
      %p63 = scmp.ne.s32.totalorder %s46, %s62
      %p64 = scmp.eq.s32.totalorder %s24, 0
      %p65 = por %p63, %p64
      %s66 = ssub.s32 %s25, %s37
      %s67 = ssub.s32 %s26, %s33
      %s68 = sor.u32 %s66, %s67
      %p69 = scmp.eq.s32.totalorder %s68, 0
      %s71 = sadd.s32 %s70, 1
      %s72 = scalar_select %p69, %s70, %s71
      %p75 = pneg %p69
      %p76 = scmp.eq.s32.totalorder %s18, 3
      %p77 = por %p75, %p76
      %p78 = scmp.ne.s32.totalorder %s70, %s73
      %p79 = scmp.eq.s32.totalorder %s18, 0
      %p80 = por %p78, %p79
      %p81 = scmp.ne.s32.totalorder %s70, %s73
      %p82 = scmp.eq.s32.totalorder %s23, 3
      %p83 = por %p81, %p82
      %p84 = scmp.ne.s32.totalorder %s73, %s74
      %p85 = scmp.eq.s32.totalorder %s23, 0
      %p86 = por %p84, %p85
      %p87 = scmp.ne.s32.totalorder %s73, %s74
      %p88 = scmp.eq.s32.totalorder %s24, 3
      %p89 = por %p87, %p88
      %p91 = scmp.ne.s32.totalorder %s74, %s90
      %p92 = scmp.eq.s32.totalorder %s24, 0
      %p93 = por %p91, %p92
      %s95 = sadd.s32 %s94, 1
      %p98 = scmp.eq.s32.totalorder %s18, 3
      %p99 = scmp.ne.s32.totalorder %s94, %s96
      %p100 = scmp.eq.s32.totalorder %s18, 0
      %p101 = por %p99, %p100
      %p102 = scmp.ne.s32.totalorder %s94, %s96
      %p103 = scmp.eq.s32.totalorder %s23, 3
      %p104 = por %p102, %p103
      %p105 = scmp.ne.s32.totalorder %s96, %s97
      %p106 = scmp.eq.s32.totalorder %s23, 0
      %p107 = por %p105, %p106
      %p108 = scmp.ne.s32.totalorder %s96, %s97
      %p109 = scmp.eq.s32.totalorder %s24, 3
      %p110 = por %p108, %p109
      %p112 = scmp.ne.s32.totalorder %s97, %s111
      %p113 = scmp.eq.s32.totalorder %s24, 0
      %p114 = por %p112, %p113
      %s116 = sadd.s32 %s115, 1
      %p119 = scmp.eq.s32.totalorder %s18, 3
      %p120 = scmp.ne.s32.totalorder %s115, %s117
      %p121 = scmp.eq.s32.totalorder %s18, 0
      %p122 = por %p120, %p121
      %p123 = scmp.ne.s32.totalorder %s115, %s117
      %p124 = scmp.eq.s32.totalorder %s23, 3
      %p125 = por %p123, %p124
      %p126 = scmp.ne.s32.totalorder %s117, %s118
      %p127 = scmp.eq.s32.totalorder %s23, 0
      %p128 = por %p126, %p127
      %p129 = scmp.ne.s32.totalorder %s117, %s118
      %p130 = scmp.eq.s32.totalorder %s24, 3
      %p131 = por %p129, %p130
      %p133 = scmp.ne.s32.totalorder %s118, %s132
      %p134 = scmp.eq.s32.totalorder %s24, 0
      %p135 = por %p133, %p134
      %s137 = sadd.s32 %s136, 1
      %p140 = scmp.eq.s32.totalorder %s18, 3
      %p141 = scmp.ne.s32.totalorder %s136, %s138
      %p142 = scmp.eq.s32.totalorder %s18, 0
      %p143 = por %p141, %p142
      %p144 = scmp.ne.s32.totalorder %s136, %s138
      %p145 = scmp.eq.s32.totalorder %s23, 3
      %p146 = por %p144, %p145
      %p147 = scmp.ne.s32.totalorder %s138, %s139
      %p148 = scmp.eq.s32.totalorder %s23, 0
      %p149 = por %p147, %p148
      %p150 = scmp.ne.s32.totalorder %s138, %s139
      %p151 = scmp.eq.s32.totalorder %s24, 3
      %p152 = por %p150, %p151
      %p154 = scmp.ne.s32.totalorder %s139, %s153
      %p155 = scmp.eq.s32.totalorder %s24, 0
      %p156 = por %p154, %p155
      %s158 = sadd.s32 %s157, 1
      %p161 = scmp.eq.s32.totalorder %s18, 3
      %p162 = scmp.ne.s32.totalorder %s157, %s159
      %p163 = scmp.eq.s32.totalorder %s18, 0
      %p164 = por %p162, %p163
      %p165 = scmp.ne.s32.totalorder %s157, %s159
      %p166 = scmp.eq.s32.totalorder %s23, 3
      %p167 = por %p165, %p166
      %p168 = scmp.ne.s32.totalorder %s159, %s160
      %p169 = scmp.eq.s32.totalorder %s23, 0
      %p170 = por %p168, %p169
      %p171 = scmp.ne.s32.totalorder %s159, %s160
      %p172 = scmp.eq.s32.totalorder %s24, 3
      %p173 = por %p171, %p172
      %p175 = scmp.ne.s32.totalorder %s160, %s174
      %p176 = scmp.eq.s32.totalorder %s24, 0
      %p177 = por %p175, %p176
      %s179 = sadd.s32 %s178, 1
      %p182 = scmp.eq.s32.totalorder %s18, 3
      %p183 = scmp.ne.s32.totalorder %s178, %s180
      %p184 = scmp.eq.s32.totalorder %s18, 0
      %p185 = por %p183, %p184
      %p186 = scmp.ne.s32.totalorder %s178, %s180
      %p187 = scmp.eq.s32.totalorder %s23, 3
      %p188 = por %p186, %p187
      %p189 = scmp.ne.s32.totalorder %s180, %s181
      %p190 = scmp.eq.s32.totalorder %s23, 0
      %p191 = por %p189, %p190
      %p192 = scmp.ne.s32.totalorder %s180, %s181
      %p193 = scmp.eq.s32.totalorder %s24, 3
      %p194 = por %p192, %p193
      %p196 = scmp.ne.s32.totalorder %s181, %s195
      %p197 = scmp.eq.s32.totalorder %s24, 0
      %p198 = por %p196, %p197
      %s199 = ssub.s32 %s25, %s37
      %s200 = ssub.s32 %s26, %s33
      %s201 = sor.u32 %s199, %s200
      %p202 = scmp.eq.s32.totalorder %s201, 0
      %s204 = sadd.s32 %s203, 1
      %s205 = scalar_select %p202, %s203, %s204
      %p208 = pneg %p202
      %p209 = scmp.eq.s32.totalorder %s18, 3
      %p210 = por %p208, %p209
      %p211 = scmp.ne.s32.totalorder %s203, %s206
      %p212 = scmp.eq.s32.totalorder %s18, 0
      %p213 = por %p211, %p212
      %p214 = scmp.ne.s32.totalorder %s203, %s206
      %p215 = scmp.eq.s32.totalorder %s23, 3
      %p216 = por %p214, %p215
      %p217 = scmp.ne.s32.totalorder %s206, %s207
      %p218 = scmp.eq.s32.totalorder %s23, 0
      %p219 = por %p217, %p218
      %p220 = scmp.ne.s32.totalorder %s206, %s207
      %p221 = scmp.eq.s32.totalorder %s24, 3
      %p222 = por %p220, %p221
      %p224 = scmp.ne.s32.totalorder %s207, %s223
      %p225 = scmp.eq.s32.totalorder %s24, 0
      %p226 = por %p224, %p225
      %p227 = scmp.le.s32.totalorder 1, %s18
      %p228 = scmp.lt.s32.totalorder %s18, 5
      %p229 = pnand %p227, %p228
      %p230 = pneg %p229
      // Predicated region
      $region9: #{tpu_custom_call.1} parent=5 // pred_check
        _
      $region10: #{tpu_custom_call.1} parent=5 // pred_check_branch
        %232 = sbr.rel (%p229) target = $region12
      $region11: #{tpu_custom_call.1} parent=5 // pred_region
        %s233 = ssub.s32 %s18, 1
        // Predicated region
        $region13: #{tpu_custom_call.1} parent=11 // pred_check
          %p234 = pneg %p107
        $region14: #{tpu_custom_call.1} parent=11 // pred_check_branch
          %236 = sbr.rel (%p234) target = $region16
        $region15: #{tpu_custom_call.1} parent=11 // pred_region
          _
        $region16: #{tpu_custom_call.1} parent=11 // pred_fallthru
          _
        // Predicated region
        $region17: #{tpu_custom_call.1} parent=11 // pred_check
          %p237 = pneg %p128
        $region18: #{tpu_custom_call.1} parent=11 // pred_check_branch
          %239 = sbr.rel (%p237) target = $region20
        $region19: #{tpu_custom_call.1} parent=11 // pred_region
          _
        $region20: #{tpu_custom_call.1} parent=11 // pred_fallthru
          _
        // Predicated region
        $region21: #{tpu_custom_call.1} parent=11 // pred_check
          %p240 = pneg %p149
        $region22: #{tpu_custom_call.1} parent=11 // pred_check_branch
          %242 = sbr.rel (%p240) target = $region24
        $region23: #{tpu_custom_call.1} parent=11 // pred_region
          _
        $region24: #{tpu_custom_call.1} parent=11 // pred_fallthru
          _
        // Predicated region
        $region25: #{tpu_custom_call.1} parent=11 // pred_check
          %p243 = pneg %p170
        $region26: #{tpu_custom_call.1} parent=11 // pred_check_branch
          %245 = sbr.rel (%p243) target = $region28
        $region27: #{tpu_custom_call.1} parent=11 // pred_region
          _
        $region28: #{tpu_custom_call.1} parent=11 // pred_fallthru
          _
        // Predicated region
        $region29: #{tpu_custom_call.1} parent=11 // pred_check
          %p246 = pneg %p191
        $region30: #{tpu_custom_call.1} parent=11 // pred_check_branch
          %248 = sbr.rel (%p246) target = $region32
        $region31: #{tpu_custom_call.1} parent=11 // pred_region
          _
        $region32: #{tpu_custom_call.1} parent=11 // pred_fallthru
          _
      $region12: #{tpu_custom_call.1} parent=5 // pred_fallthru
        _
      %p249 = scmp.lt.s32.totalorder %s18, 4
      // Predicated region
      $region33: #{tpu_custom_call.1} parent=5 // pred_check
        %p250 = pneg %p249
      $region34: #{tpu_custom_call.1} parent=5 // pred_check_branch
        %252 = sbr.rel (%p250) target = $region36
      $region35: #{tpu_custom_call.1} parent=5 // pred_region
        // Predicated region
        $region37: #{tpu_custom_call.1} parent=35 // pred_check
          %p253 = pneg %p52
        $region38: #{tpu_custom_call.1} parent=35 // pred_check_branch
          %255 = sbr.rel (%p253) target = $region40
        $region39: #{tpu_custom_call.1} parent=35 // pred_region
          %p256 = scmp.lt.s32.totalorder %s25, 1
          %s257 = scalar_select %p256, %s25, 1
          %p258 = scmp.lt.s32.totalorder %s26, 1
          %s259 = scalar_select %p258, %s26, 1
          %s260 = smul.addr %s257, 2
          %s261 = sadd.s32 %s259, %s260
          %s262 = smul.addr %s261, 2
          %s263 = scalar_lea.vmem %s0, %s262
        $region40: #{tpu_custom_call.1} parent=35 // pred_fallthru
          _
        // Predicated region
        $region41: #{tpu_custom_call.1} parent=35 // pred_check
          %p264 = pneg %p80
        $region42: #{tpu_custom_call.1} parent=35 // pred_check_branch
          %266 = sbr.rel (%p264) target = $region44
        $region43: #{tpu_custom_call.1} parent=35 // pred_region
          %p267 = scmp.lt.s32.totalorder %s25, 1
          %s268 = scalar_select %p267, %s25, 1
          %p269 = scmp.lt.s32.totalorder %s26, 1
          %s270 = scalar_select %p269, %s26, 1
          %s271 = smul.addr %s268, 2
          %s272 = sadd.s32 %s270, %s271
          %s273 = smul.addr %s272, 2
          %s274 = scalar_lea.vmem %s1, %s273
        $region44: #{tpu_custom_call.1} parent=35 // pred_fallthru
          _
      $region36: #{tpu_custom_call.1} parent=5 // pred_fallthru
        _
      %p275 = scmp.le.s32.totalorder 1, %s18
      %p276 = scmp.lt.s32.totalorder %s18, 5
      %p277 = pnand %p275, %p276
      %p278 = pneg %p277
      // Predicated region
      $region45: #{tpu_custom_call.1} parent=5 // pred_check
        _
      $region46: #{tpu_custom_call.1} parent=5 // pred_check_branch
        %280 = sbr.rel (%p277) target = $region48
      $region47: #{tpu_custom_call.1} parent=5 // pred_region
        %s281 = ssub.s32 %s18, 1
        %p282 = scmp.lt.s32.totalorder %s27, 1
        %s283 = scalar_select %p282, %s27, 1
        %p284 = scmp.lt.s32.totalorder %s28, 1
        %s285 = scalar_select %p284, %s28, 1
        %s286 = smul.addr %s283, 2
        %s287 = sadd.s32 %s285, %s286
        %s288 = smul.addr %s287, 2
        %s289 = scalar_lea.vmem %s0, %s288
        %p290 = pneg %p58
        %p291 = pneg %p55
        %p292 = scmp.lt.s32.totalorder %s27, 1
        %s293 = scalar_select %p292, %s27, 1
        %p294 = scmp.lt.s32.totalorder %s28, 1
        %s295 = scalar_select %p294, %s28, 1
        %s296 = smul.addr %s293, 2
        %s297 = sadd.s32 %s295, %s296
        %s298 = smul.addr %s297, 2
        %s299 = scalar_lea.vmem %s1, %s298
        %p300 = pneg %p86
        %p301 = pneg %p83
        %p302 = pneg %p107
        %p303 = pneg %p104
        %p304 = pneg %p128
        %p305 = pneg %p125
        %p306 = pneg %p149
        %p307 = pneg %p146
        %p308 = pneg %p170
        %p309 = pneg %p167
        %p310 = pneg %p191
        %p311 = pneg %p188
        %p312 = pneg %p219
        %p313 = pneg %p216
        %s314 = sand.u32 %s206, 1
        %s315 = scalar_lea.sflag [#allocation4], %s314
        %s316 = sand.u32 %s206, 1
        %s317 = smul.addr %s316, 4
        %s318 = scalar_lea.vmem [#allocation3], %s317
        %p319 = scmp.lt.s32.totalorder %s27, 1
        %s320 = scalar_select %p319, %s27, 1
        %p321 = scmp.lt.s32.totalorder %s28, 1
        %s322 = scalar_select %p321, %s28, 1
        %s323 = smul.addr %s320, 2
        %s324 = sadd.s32 %s322, %s323
        %s325 = smul.addr %s324, 2
        %s326 = scalar_lea.vmem %s0, %s325
        %p327 = scmp.lt.s32.totalorder %s27, 1
        %s328 = scalar_select %p327, %s27, 1
        %p329 = scmp.lt.s32.totalorder %s28, 1
        %s330 = scalar_select %p329, %s28, 1
        %s331 = smul.addr %s328, 2
        %s332 = sadd.s32 %s330, %s331
        %s333 = smul.addr %s332, 2
        %s334 = scalar_lea.vmem %s1, %s333
        %v336 = vld [vmem:[%s334] sm:$0x3]
        %v337 = vld [vmem:[%s2] sm:$0xf]
        %v338 = vld [vmem:[%s326] sm:$0x3]
        %v339 = vld [vmem:[%s3] sm:$0xf]
        %vm340 = vcmask 31744
        %v342 = vsel %vm340, %v339, 0
        %vm344 = vcmask 1041408
        %v346 = vsel %vm344, %v336, 0
        %348 = vmatprep.subr.bf16.mxu0 0
        %349 = vmatpush1.bf16.msra.mxu0 0
        %350 = vmatprep.subr.bf16.mxu0 0
        %351 = vmatpush1.bf16.msra.mxu0 0
        %352 = vmatprep.subr.bf16.mxu0 0
        %353 = vmatpush1.bf16.msra.mxu0 0
        %354 = vmatprep.subr.bf16.mxu0 0
        %355 = vmatpush1.bf16.msra.mxu0 0
        %356 = vmatprep.subr.bf16.mxu0 0
        %357 = vmatpush1.bf16.msra.mxu0 0
        %358 = vmatprep.subr.bf16.mxu0 0
        %359 = vmatpush1.bf16.msra.mxu0 0
        %360 = vmatprep.subr.bf16.mxu0 0
        %361 = vmatpush1.bf16.msra.mxu0 0
        %362 = vmatprep.subr.bf16.mxu0 0
        %363 = vmatpush1.bf16.msra.mxu0 %v346
        %364 = vmatprep.subr.bf16.mxu0 0
        %365 = vmatpush2.bf16.msra.mxu0 0
        %366 = vmatprep.subr.bf16.mxu0 0
        %367 = vmatpush2.bf16.msra.mxu0 0
        %368 = vmatprep.subr.bf16.mxu0 0
        %369 = vmatpush2.bf16.msra.mxu0 0
        %370 = vmatprep.subr.bf16.mxu0 0
        %371 = vmatpush2.bf16.msra.mxu0 0
        %372 = vmatprep.subr.bf16.mxu0 0
        %373 = vmatpush2.bf16.msra.mxu0 0
        %374 = vmatprep.subr.bf16.mxu0 0
        %375 = vmatpush2.bf16.msra.mxu0 0
        %376 = vmatprep.subr.bf16.mxu0 0
        %377 = vmatpush2.bf16.msra.mxu0 0
        %378 = vmatprep.subr.bf16.mxu0 0
        %379 = vmatpush2.bf16.msra.mxu0 0
        %380 = vmatprep.mubr.bf16.mxu0 0
        %381 = vmatmul.mubr.bf16.gmra.mxu0 %v342
        %v382 = vpop.f32.mrf.mxu0
        %v383 = vadd.f32 0.0, %v382
        %v384 = vpop.f32.mrf.mxu0
        %v385 = vpop.f32.mrf.mxu0
        %v386 = vpop.f32.mrf.mxu0
        %387 = vdwg.mxu0
        %v389 = vsel %vm340, %v337, 0
        %v392 = vsel %vm344, %v338, 0
        %394 = vmatprep.subr.bf16.mxu0 0
        %395 = vmatpush1.bf16.msra.mxu0 0
        %396 = vmatprep.subr.bf16.mxu0 0
        %397 = vmatpush1.bf16.msra.mxu0 0
        %398 = vmatprep.subr.bf16.mxu0 0
        %399 = vmatpush1.bf16.msra.mxu0 0
        %400 = vmatprep.subr.bf16.mxu0 0
        %401 = vmatpush1.bf16.msra.mxu0 0
        %402 = vmatprep.subr.bf16.mxu0 0
        %403 = vmatpush1.bf16.msra.mxu0 0
        %404 = vmatprep.subr.bf16.mxu0 0
        %405 = vmatpush1.bf16.msra.mxu0 0
        %406 = vmatprep.subr.bf16.mxu0 0
        %407 = vmatpush1.bf16.msra.mxu0 0
        %408 = vmatprep.subr.bf16.mxu0 0
        %409 = vmatpush1.bf16.msra.mxu0 %v392
        %410 = vmatprep.subr.bf16.mxu0 0
        %411 = vmatpush2.bf16.msra.mxu0 0
        %412 = vmatprep.subr.bf16.mxu0 0
        %413 = vmatpush2.bf16.msra.mxu0 0
        %414 = vmatprep.subr.bf16.mxu0 0
        %415 = vmatpush2.bf16.msra.mxu0 0
        %416 = vmatprep.subr.bf16.mxu0 0
        %417 = vmatpush2.bf16.msra.mxu0 0
        %418 = vmatprep.subr.bf16.mxu0 0
        %419 = vmatpush2.bf16.msra.mxu0 0
        %420 = vmatprep.subr.bf16.mxu0 0
        %421 = vmatpush2.bf16.msra.mxu0 0
        %422 = vmatprep.subr.bf16.mxu0 0
        %423 = vmatpush2.bf16.msra.mxu0 0
        %424 = vmatprep.subr.bf16.mxu0 0
        %425 = vmatpush2.bf16.msra.mxu0 0
        %426 = vmatprep.mubr.bf16.mxu0 0
        %427 = vmatmul.mubr.bf16.gmra.mxu0 %v389
        %v428 = vpop.f32.mrf.mxu0
        %v429 = vadd.f32 %v383, %v428
        %v430 = vpop.f32.mrf.mxu0
        %v431 = vpop.f32.mrf.mxu0
        %v432 = vpop.f32.mrf.mxu0
        %433 = vdwg.mxu0
        %v434 = vld [vmem:[%s4] sm:$0xff]
        %436 = vset.pattern.permute.xlu0 0
        %437 = vperm.xlu0 %436, %v434
        %v438 = vpop.permute.xlu0 %437
        %v440 = vadd.f32 %v429, %v438
        %v441 = vmax.f32 %v440, 0.0
        %v442 = vld [vmem:[%s5] sm:$0x1]
        %v443 = vld [vmem:[#allocation2] sm:$0x1]
        %445 = vset.pattern.permute.xlu0 0
        %446 = vperm.xlu0 %445, %v443
        %v447 = vpop.permute.xlu0 %446
        %v449 = vlaneseq
        %v450 = vshrl.u32 %v449, 7
        %v451 = vsub.s32 0, %v450
        %v452 = vrot.slane %v447, %v451
        %vm453 = vcmask 64512
        %v455 = vsel %vm453, %v442, 0
        %457 = vmatprep.subr.mxu0 0.0
        %458 = vmatpush1.msra.mxu0 0.0
        %459 = vmatprep.subr.mxu0 0.0
        %460 = vmatpush1.msra.mxu0 0.0
        %461 = vmatprep.subr.mxu0 0.0
        %462 = vmatpush1.msra.mxu0 0.0
        %463 = vmatprep.subr.mxu0 0.0
        %464 = vmatpush1.msra.mxu0 0.0
        %465 = vmatprep.subr.mxu0 0.0
        %466 = vmatpush1.msra.mxu0 0.0
        %467 = vmatprep.subr.mxu0 0.0
        %468 = vmatpush1.msra.mxu0 0.0
        %469 = vmatprep.subr.mxu0 0.0
        %470 = vmatpush1.msra.mxu0 0.0
        %471 = vmatprep.subr.mxu0 0.0
        %472 = vmatpush1.msra.mxu0 0.0
        %473 = vmatprep.subr.mxu0 0.0
        %474 = vmatpush1.msra.mxu0 0.0
        %475 = vmatprep.subr.mxu0 0.0
        %476 = vmatpush1.msra.mxu0 0.0
        %477 = vmatprep.subr.mxu0 0.0
        %478 = vmatpush1.msra.mxu0 0.0
        %479 = vmatprep.subr.mxu0 0.0
        %480 = vmatpush1.msra.mxu0 0.0
        %481 = vmatprep.subr.mxu0 0.0
        %482 = vmatpush1.msra.mxu0 0.0
        %483 = vmatprep.subr.mxu0 0.0
        %484 = vmatpush1.msra.mxu0 0.0
        %485 = vmatprep.subr.mxu0 0.0
        %486 = vmatpush1.msra.mxu0 0.0
        %487 = vmatprep.subr.mxu0 0.0
        %488 = vmatpush1.msra.mxu0 %v441
        %489 = vmatprep.subr.mxu0 0.0
        %490 = vmatpush2.msra.mxu0 0.0
        %491 = vmatprep.subr.mxu0 0.0
        %492 = vmatpush2.msra.mxu0 0.0
        %493 = vmatprep.subr.mxu0 0.0
        %494 = vmatpush2.msra.mxu0 0.0
        %495 = vmatprep.subr.mxu0 0.0
        %496 = vmatpush2.msra.mxu0 0.0
        %497 = vmatprep.subr.mxu0 0.0
        %498 = vmatpush2.msra.mxu0 0.0
        %499 = vmatprep.subr.mxu0 0.0
        %500 = vmatpush2.msra.mxu0 0.0
        %501 = vmatprep.subr.mxu0 0.0
        %502 = vmatpush2.msra.mxu0 0.0
        %503 = vmatprep.subr.mxu0 0.0
        %504 = vmatpush2.msra.mxu0 0.0
        %505 = vmatprep.subr.mxu0 0.0
        %506 = vmatpush2.msra.mxu0 0.0
        %507 = vmatprep.subr.mxu0 0.0
        %508 = vmatpush2.msra.mxu0 0.0
        %509 = vmatprep.subr.mxu0 0.0
        %510 = vmatpush2.msra.mxu0 0.0
        %511 = vmatprep.subr.mxu0 0.0
        %512 = vmatpush2.msra.mxu0 0.0
        %513 = vmatprep.subr.mxu0 0.0
        %514 = vmatpush2.msra.mxu0 0.0
        %515 = vmatprep.subr.mxu0 0.0
        %516 = vmatpush2.msra.mxu0 0.0
        %517 = vmatprep.subr.mxu0 0.0
        %518 = vmatpush2.msra.mxu0 0.0
        %519 = vmatprep.subr.mxu0 0.0
        %520 = vmatpush2.msra.mxu0 0.0
        %521 = vmatprep.mubr.f32.mxu0 0.0
        %522 = vmatmul.mubr.f32.gmra.mxu0 %v455
        %v523 = vpop.f32.mrf.mxu0
        %v524 = vadd.f32 %v452, %v523
        %v525 = vpop.f32.mrf.mxu0
        %526 = vdwg.mxu0
        %v527 = vsub.f32 0.0, %v524
        %v528 = vmul.f32 %v527, 1.442695
        %v529 = vpow.pop %v528
        %v530 = vadd.f32 %v529, 1.0
        %v531 = vrcp.pop %v530
        %v532 = vunpack.c.l.bf16 %v336
        %v533 = vlaneseq
        %v534 = vshrl.u32 %v533, 7
        %v535 = vsub.s32 0, %v534
        %v536 = vrot.slane %v531, %v535
        %v537 = vmul.f32 %v532, %v536
        %538 = vst [vmem:[%s318] sm:$0xf] %v537
        %s539 = sand.u32 %s206, 1
        %s540 = scalar_lea.sflag [#allocation4], %s539
        %s541 = sand.u32 %s206, 1
        %s542 = smul.addr %s541, 4
        %s543 = scalar_lea.vmem [#allocation3], %s542
        // Predicated region
        $region49: #{tpu_custom_call.1} parent=47 // pred_check
          %p544 = pneg %p216
        $region50: #{tpu_custom_call.1} parent=47 // pred_check_branch
          %546 = sbr.rel (%p544) target = $region52
        $region51: #{tpu_custom_call.1} parent=47 // pred_region
          %s548 = ssub.s32 64, 64
          %549 = vsyncadd %s540, %s548
          %s550 = smul.addr %s27, 2
          %s551 = sadd.s32 %s28, %s550
          %s552 = smul.addr %s551, 64
          %s553 = scalar_lea.hbm %s7, %s552
          %s555 = sshll.u32 %s543, 4
          %s556 = int_to_ptr.vmem [resolvable:$true] %s555
          %558 = dma.vmem_to_hbm [thread:$0]  %s556, 64, %s553, %s540
        $region52: #{tpu_custom_call.1} parent=47 // pred_fallthru
          _
      $region48: #{tpu_custom_call.1} parent=5 // pred_fallthru
        _
      %p559 = scmp.le.s32.totalorder 2, %s18
      // Predicated region
      $region53: #{tpu_custom_call.1} parent=5 // pred_check
        %p560 = pneg %p559
      $region54: #{tpu_custom_call.1} parent=5 // pred_check_branch
        %562 = sbr.rel (%p560) target = $region56
      $region55: #{tpu_custom_call.1} parent=5 // pred_region
        %s563 = ssub.s32 %s18, 2
        // Predicated region
        $region57: #{tpu_custom_call.1} parent=55 // pred_check
          %p564 = pneg %p222
        $region58: #{tpu_custom_call.1} parent=55 // pred_check_branch
          %566 = sbr.rel (%p564) target = $region60
        $region59: #{tpu_custom_call.1} parent=55 // pred_region
          %s567 = sand.u32 %s207, 1
          %s568 = scalar_lea.sflag [#allocation4], %s567
          %s569 = sand.u32 %s207, 1
          %s570 = smul.addr %s569, 4
          %s571 = scalar_lea.vmem [#allocation3], %s570
          %572 = dma.done %s568, 64
        $region60: #{tpu_custom_call.1} parent=55 // pred_fallthru
          _
      $region56: #{tpu_custom_call.1} parent=5 // pred_fallthru
        _
    $region6: #{tpu_custom_call.1} parent=1 // loop_footer
      %s22 = sadd.s32 1, %s18
    $region7: #{tpu_custom_call.1} parent=1 // loop_footer_branch
      %17 = sbr.rel target = $region3
    $region8: #{tpu_custom_call.1} parent=1 // loop_exit
      _
    %573 = vsyncpa [#allocation4], 1
    %s574 = scalar_lea.sflag [#allocation4], 1
    %575 = vsyncpa %s574, 1

</llo_original>
